<compile_context>
chip_gen: v6e
topology: v6e:2x2x1
jax: 0.10.0
libtpu: 0.0.40
codegen_flags: <defaults>
</compile_context>

<pallas_src>
import functools

import jax
import jax.numpy as jnp
from jax.experimental import pallas as pl
from jax.experimental.pallas import tpu as pltpu


def _gcnet_kernel(x_ref, bm_ref, colp_ref, rowp_ref, w1t_ref, w2_ref, o_ref, *,
                  fusion_type, eps, hw_valid):
    # x: (Bt, C, HWp) slab for the current batch chunk (C on sublanes, HW on lanes).
    x = x_ref[...].astype(jnp.float32)

    wm = colp_ref[:, 0:1]          # (C, 1) conv_mask weight (transposed)
    b2 = colp_ref[:, 1:2]          # (C, 1) conv2 bias
    b1 = rowp_ref[0:1, :]          # (1, O) conv1 bias
    gamma = rowp_ref[1:2, :]       # (1, O) LayerNorm gamma
    beta = rowp_ref[2:3, :]        # (1, O) LayerNorm beta

    # ---- conv_mask: 1x1 conv C -> 1 at every spatial position ----
    logits = jnp.sum(x * wm[None], axis=1, keepdims=True) + bm_ref[0, 0]   # (Bt,1,HWp)

    # ---- softmax over the valid spatial positions (torch Softmax(dim=2)) ----
    if hw_valid is not None:
        lane = jax.lax.broadcasted_iota(jnp.int32, (1, logits.shape[-1]), 1)
        logits = jnp.where((lane < hw_valid)[None], logits, -1e30)
    m = jnp.max(logits, axis=-1, keepdims=True)
    e = jnp.exp(logits - m)
    p = e / jnp.sum(e, axis=-1, keepdims=True)                             # (Bt,1,HWp)

    # ---- context pooling: matmul(input_x, mask) -> (Bt, C, 1) ----
    ctx = jnp.sum(x * p, axis=-1, keepdims=True)

    # ---- channel_conv: conv1x1 (C->O) -> LayerNorm([O,1,1]) -> ReLU -> conv1x1 (O->C) ----
    hid = jnp.sum(ctx * w1t_ref[...][None], axis=1, keepdims=True) + b1[None]   # (Bt,1,O)
    mu = jnp.mean(hid, axis=-1, keepdims=True)
    var = jnp.mean(jnp.square(hid - mu), axis=-1, keepdims=True)
    hid = (hid - mu) * jax.lax.rsqrt(var + eps)
    hid = hid * gamma[None] + beta[None]
    hid = jnp.maximum(hid, 0.0)
    ctx_c = jnp.sum(w2_ref[...][None] * hid, axis=-1, keepdims=True) + b2[None]  # (Bt,C,1)

    # ---- fusion ----
    if fusion_type == 'add':
        y = x + ctx_c
    else:  # 'mul'
        y = x * jax.nn.sigmoid(ctx_c)
    o_ref[...] = y.astype(o_ref.dtype)


def gcnet_atten_pallas(x, params, *, fusion_type='mul', eps=1e-5,
                       max_block_bytes=2 * 1024 * 1024):
    assert fusion_type in ('add', 'mul')
    B, C, H, W = x.shape
    HW = H * W
    out_dim = params['w1t'].shape[1]

    # Lane-dense spatial axis: pad HW up to a multiple of 128 (mask inside the softmax).
    HWp = ((HW + 127) // 128) * 128
    xf = x.reshape(B, C, HW)
    if HWp != HW:
        xf = jnp.pad(xf, ((0, 0), (0, 0), (0, HWp - HW)))

    # Images per grid step: feed the DMA pipeline with big blocks, but keep
    # double-buffered in+out (+ temporaries) inside scoped VMEM and keep >= 2 grid
    # steps so the v7x megacore has work on both TensorCores.
    bytes_per_img = C * HWp * xf.dtype.itemsize
    bt = max(1, min(B, max_block_bytes // max(bytes_per_img, 1)))
    if B >= 2:
        bt = min(bt, -(-B // 2))
    n_steps = -(-B // bt)
    Bp = n_steps * bt
    if Bp != B:
        xf = jnp.pad(xf, ((0, Bp - B), (0, 0), (0, 0)))   # zero images are harmless

    # TODO(synk): for very large C*HW (single image block >> a few MiB, esp. on v7x's
    # 64 MiB VMEM) switch to an HW-tiled two-phase online-softmax variant instead of
    # one (C, HWp) block per image.
    block_bytes = bt * bytes_per_img
    vmem_limit = min(max(32 * 1024 * 1024, 8 * block_bytes), 120 * 1024 * 1024)

    # Pack small parameters into a few slabs (fewer DMAs, less padded VMEM residency).
    col_params = jnp.concatenate([params['wm'], params['b2']], axis=1)       # (C, 2)
    row_params = jnp.concatenate(
        [params['b1'], params['gamma'], params['beta']], axis=0)             # (3, O)

    kernel = functools.partial(_gcnet_kernel, fusion_type=fusion_type, eps=eps,
                               hw_valid=(HW if HWp != HW else None))

    def fixed(shape):
        nd = len(shape)
        return pl.BlockSpec(shape, lambda i, _nd=nd: (0,) * _nd)

    yf = pl.pallas_call(
        kernel,
        out_shape=jax.ShapeDtypeStruct((Bp, C, HWp), x.dtype),
        grid=(n_steps,),
        in_specs=[
            pl.BlockSpec((bt, C, HWp), lambda i: (i, 0, 0)),   # x slab (Bt images)
            fixed((1, 1)),                                     # conv_mask bias
            fixed((C, 2)),                                     # [wm | b2]
            fixed((3, out_dim)),                               # [b1; gamma; beta]
            fixed((C, out_dim)),                               # conv1 weight (transposed)
            fixed((C, out_dim)),                               # conv2 weight
        ],
        out_specs=pl.BlockSpec((bt, C, HWp), lambda i: (i, 0, 0)),
        compiler_params=pltpu.CompilerParams(
            dimension_semantics=("parallel",),
            vmem_limit_bytes=vmem_limit),
    )(xf, params['bm'], col_params, row_params, params['w1t'], params['w2'])

    yf = yf[:B, :, :HW]
    return yf.reshape(B, C, H, W)


def gcnet_atten_ref(x, params, *, fusion_type='mul', eps=1e-5):
    """Plain-JAX reference mirroring the PyTorch forward, for validation."""
    B, C, H, W = x.shape
    HW = H * W
    xf = x.reshape(B, C, HW)
    logits = jnp.einsum('bcl,co->bol', xf, params['wm']) + params['bm'][0, 0]  # (B,1,HW)
    p = jax.nn.softmax(logits, axis=-1)
    ctx = jnp.einsum('bcl,bol->bc', xf, p)                                      # (B,C)
    hid = jnp.einsum('bc,co->bo', ctx, params['w1t']) + params['b1']            # (B,O)
    mu = jnp.mean(hid, axis=-1, keepdims=True)
    var = jnp.mean((hid - mu) ** 2, axis=-1, keepdims=True)
    hid = (hid - mu) / jnp.sqrt(var + eps) * params['gamma'] + params['beta']
    hid = jnp.maximum(hid, 0.0)
    ctx_c = jnp.einsum('co,bo->bc', params['w2'], hid) + params['b2'][:, 0]     # (B,C)
    ctx_c = ctx_c[:, :, None]
    if fusion_type == 'add':
        y = xf + ctx_c
    else:
        y = xf * jax.nn.sigmoid(ctx_c)
    return y.reshape(B, C, H, W)


def init_params(key, in_dim, reduction=4):
    out_dim = in_dim // reduction if in_dim >= reduction else 1
    ks = jax.random.split(key, 8)
    p = {
        # conv_mask: Conv2d(C, 1, 1) -> weight stored transposed as (C, 1)
        'wm': 0.2 * jax.random.normal(ks[0], (in_dim, 1), jnp.float32),
        'bm': 0.1 * jax.random.normal(ks[1], (1, 1), jnp.float32),
        # channel_conv[0]: Conv2d(C, O, 1) -> weight stored transposed as (C, O)
        'w1t': 0.2 * jax.random.normal(ks[2], (in_dim, out_dim), jnp.float32),
        'b1': 0.1 * jax.random.normal(ks[3], (1, out_dim), jnp.float32),
        # LayerNorm([O, 1, 1])
        'gamma': 1.0 + 0.1 * jax.random.normal(ks[4], (1, out_dim), jnp.float32),
        'beta': 0.1 * jax.random.normal(ks[5], (1, out_dim), jnp.float32),
        # channel_conv[3]: Conv2d(O, C, 1) -> weight stored as (C, O)
        'w2': 0.2 * jax.random.normal(ks[6], (in_dim, out_dim), jnp.float32),
        'b2': 0.1 * jax.random.normal(ks[7], (in_dim, 1), jnp.float32),
    }
    return p


if __name__ == "__main__":
    key = jax.random.PRNGKey(0)
    kx, kp, kx2 = jax.random.split(key, 3)

    # Case 1: lane-aligned spatial size (HW = 256), fusion_type='mul'.
    B, C, H, W = 2, 8, 16, 16         # in_dim=8, reduction=4 -> out_dim=2
    params = init_params(kp, C, reduction=4)
    x = jax.random.normal(kx, (B, C, H, W), jnp.float32)

    y = jax.block_until_ready(gcnet_atten_pallas(x, params, fusion_type='mul'))
    y_ref = gcnet_atten_ref(x, params, fusion_type='mul')
    assert y.shape == (B, C, H, W)
    assert jnp.allclose(y, y_ref, rtol=1e-5, atol=1e-5), "mismatch vs reference (mul)"

    # Case 2: same shape, fusion_type='add'.
    y = jax.block_until_ready(gcnet_atten_pallas(x, params, fusion_type='add'))
    y_ref = gcnet_atten_ref(x, params, fusion_type='add')
    assert jnp.allclose(y, y_ref, rtol=1e-5, atol=1e-5), "mismatch vs reference (add)"

    # Case 3: non-128-multiple spatial size + odd batch -> exercises lane padding,
    # the in-kernel softmax mask, and batch padding with multi-image blocks.
    B2, H2, W2 = 3, 12, 12
    x2 = jax.random.normal(kx2, (B2, C, H2, W2), jnp.float32)
    y2 = jax.block_until_ready(gcnet_atten_pallas(x2, params, fusion_type='mul'))
    y2_ref = gcnet_atten_ref(x2, params, fusion_type='mul')
    assert y2.shape == (B2, C, H2, W2)
    assert jnp.allclose(y2, y2_ref, rtol=1e-5, atol=1e-5), "mismatch vs reference (padded)"

    print("KERNEL_OK")
</pallas_src>

<mosaic_0001>
module attributes {stable_mosaic.version = 11 : i64} {
  func.func @_gcnet_kernel(%arg0: i32, %arg1: memref<1x8x256xf32, #tpu.memory_space<vmem>>, %arg2: memref<1x1xf32, #tpu.memory_space<vmem>>, %arg3: memref<8x2xf32, #tpu.memory_space<vmem>>, %arg4: memref<3x2xf32, #tpu.memory_space<vmem>>, %arg5: memref<8x2xf32, #tpu.memory_space<vmem>>, %arg6: memref<8x2xf32, #tpu.memory_space<vmem>>, %arg7: memref<1x8x256xf32, #tpu.memory_space<vmem>>) attributes {dimension_semantics = [#tpu.dimension_semantics<parallel>], iteration_bounds = array<i64: 2>, scalar_prefetch = 0 : i64, scratch_operands = 0 : i64, tpu.core_type = #tpu.core_type<tc>, window_params = [{transform_indices = @transform_0, window_bounds = array<i64: 1, 8, 256>}, {pipeline_mode = #tpu.pipeline_mode<synchronous>, transform_indices = @transform_1, window_bounds = array<i64: 1, 1>}, {pipeline_mode = #tpu.pipeline_mode<synchronous>, transform_indices = @transform_2, window_bounds = array<i64: 8, 2>}, {pipeline_mode = #tpu.pipeline_mode<synchronous>, transform_indices = @transform_3, window_bounds = array<i64: 3, 2>}, {pipeline_mode = #tpu.pipeline_mode<synchronous>, transform_indices = @transform_4, window_bounds = array<i64: 8, 2>}, {pipeline_mode = #tpu.pipeline_mode<synchronous>, transform_indices = @transform_5, window_bounds = array<i64: 8, 2>}, {transform_indices = @transform_6, window_bounds = array<i64: 1, 8, 256>}]} {
    %c0 = arith.constant 0 : index
    %c0_0 = arith.constant 0 : index
    %c0_1 = arith.constant 0 : index
    %0 = vector.load %arg1[%c0, %c0_0, %c0_1] : memref<1x8x256xf32, #tpu.memory_space<vmem>>, vector<1x8x256xf32>
    %c0_2 = arith.constant 0 : index
    %c0_3 = arith.constant 0 : index
    %1 = vector.load %arg3[%c0_2, %c0_3] : memref<8x2xf32, #tpu.memory_space<vmem>>, vector<8x1xf32>
    %c0_4 = arith.constant 0 : index
    %c1 = arith.constant 1 : index
    %2 = vector.load %arg3[%c0_4, %c1] : memref<8x2xf32, #tpu.memory_space<vmem>>, vector<8x1xf32>
    %c0_5 = arith.constant 0 : index
    %c0_6 = arith.constant 0 : index
    %3 = vector.load %arg4[%c0_5, %c0_6] : memref<3x2xf32, #tpu.memory_space<vmem>>, vector<1x2xf32>
    %c1_7 = arith.constant 1 : index
    %c0_8 = arith.constant 0 : index
    %4 = vector.load %arg4[%c1_7, %c0_8] : memref<3x2xf32, #tpu.memory_space<vmem>>, vector<1x2xf32>
    %c2 = arith.constant 2 : index
    %c0_9 = arith.constant 0 : index
    %5 = vector.load %arg4[%c2, %c0_9] : memref<3x2xf32, #tpu.memory_space<vmem>>, vector<1x2xf32>
    %6 = vector.shape_cast %1 : vector<8x1xf32> to vector<1x8x1xf32>
    %7 = vector.broadcast %6 : vector<1x8x1xf32> to vector<1x8x256xf32>
    %8 = arith.mulf %0, %7 : vector<1x8x256xf32>
    %cst = arith.constant dense<0.000000e+00> : vector<1x256xf32>
    %9 = vector.multi_reduction <add>, %8, %cst [1] : vector<1x8x256xf32> to vector<1x256xf32>
    %10 = vector.shape_cast %9 : vector<1x256xf32> to vector<1x1x256xf32>
    %c0_10 = arith.constant 0 : index
    %c0_11 = arith.constant 0 : index
    %11 = vector.load %arg2[%c0_10, %c0_11] : memref<1x1xf32, #tpu.memory_space<vmem>>, vector<1x1xf32>
    %12 = vector.extract %11[0, 0] : f32 from vector<1x1xf32>
    %13 = vector.broadcast %12 : f32 to vector<1x1x256xf32>
    %14 = arith.addf %10, %13 : vector<1x1x256xf32>
    %cst_12 = arith.constant dense<0xFF800000> : vector<1x1xf32>
    %15 = vector.multi_reduction <maximumf>, %14, %cst_12 [2] : vector<1x1x256xf32> to vector<1x1xf32>
    %16 = vector.shape_cast %15 : vector<1x1xf32> to vector<1x1x1xf32>
    %17 = vector.broadcast %16 : vector<1x1x1xf32> to vector<1x1x256xf32>
    %18 = arith.subf %14, %17 : vector<1x1x256xf32>
    %19 = math.exp %18 : vector<1x1x256xf32>
    %cst_13 = arith.constant dense<0.000000e+00> : vector<1x1xf32>
    %20 = vector.multi_reduction <add>, %19, %cst_13 [2] : vector<1x1x256xf32> to vector<1x1xf32>
    %21 = vector.shape_cast %20 : vector<1x1xf32> to vector<1x1x1xf32>
    %22 = vector.broadcast %21 : vector<1x1x1xf32> to vector<1x1x256xf32>
    %23 = arith.divf %19, %22 : vector<1x1x256xf32>
    %24 = vector.broadcast %23 : vector<1x1x256xf32> to vector<1x8x256xf32>
    %25 = arith.mulf %0, %24 : vector<1x8x256xf32>
    %cst_14 = arith.constant dense<0.000000e+00> : vector<1x8xf32>
    %26 = vector.multi_reduction <add>, %25, %cst_14 [2] : vector<1x8x256xf32> to vector<1x8xf32>
    %27 = vector.shape_cast %26 : vector<1x8xf32> to vector<1x8x1xf32>
    %c0_15 = arith.constant 0 : index
    %c0_16 = arith.constant 0 : index
    %28 = vector.load %arg5[%c0_15, %c0_16] : memref<8x2xf32, #tpu.memory_space<vmem>>, vector<8x2xf32>
    %29 = vector.shape_cast %28 : vector<8x2xf32> to vector<1x8x2xf32>
    %30 = vector.broadcast %27 : vector<1x8x1xf32> to vector<1x8x2xf32>
    %31 = arith.mulf %30, %29 : vector<1x8x2xf32>
    %cst_17 = arith.constant dense<0.000000e+00> : vector<1x2xf32>
    %32 = vector.multi_reduction <add>, %31, %cst_17 [1] : vector<1x8x2xf32> to vector<1x2xf32>
    %33 = vector.shape_cast %32 : vector<1x2xf32> to vector<1x1x2xf32>
    %34 = vector.shape_cast %3 : vector<1x2xf32> to vector<1x1x2xf32>
    %35 = arith.addf %33, %34 : vector<1x1x2xf32>
    %cst_18 = arith.constant dense<0.000000e+00> : vector<1x1xf32>
    %36 = vector.multi_reduction <add>, %35, %cst_18 [2] : vector<1x1x2xf32> to vector<1x1xf32>
    %37 = vector.shape_cast %36 : vector<1x1xf32> to vector<1x1x1xf32>
    %cst_19 = arith.constant 2.000000e+00 : f32
    %38 = vector.broadcast %cst_19 : f32 to vector<1x1x1xf32>
    %39 = arith.divf %37, %38 : vector<1x1x1xf32>
    %40 = vector.broadcast %39 : vector<1x1x1xf32> to vector<1x1x2xf32>
    %41 = arith.subf %35, %40 : vector<1x1x2xf32>
    %42 = arith.mulf %41, %41 : vector<1x1x2xf32>
    %cst_20 = arith.constant dense<0.000000e+00> : vector<1x1xf32>
    %43 = vector.multi_reduction <add>, %42, %cst_20 [2] : vector<1x1x2xf32> to vector<1x1xf32>
    %44 = vector.shape_cast %43 : vector<1x1xf32> to vector<1x1x1xf32>
    %cst_21 = arith.constant 2.000000e+00 : f32
    %45 = vector.broadcast %cst_21 : f32 to vector<1x1x1xf32>
    %46 = arith.divf %44, %45 : vector<1x1x1xf32>
    %47 = vector.broadcast %39 : vector<1x1x1xf32> to vector<1x1x2xf32>
    %48 = arith.subf %35, %47 : vector<1x1x2xf32>
    %cst_22 = arith.constant 9.99999974E-6 : f32
    %49 = vector.broadcast %cst_22 : f32 to vector<1x1x1xf32>
    %50 = arith.addf %46, %49 : vector<1x1x1xf32>
    %51 = math.rsqrt %50 : vector<1x1x1xf32>
    %52 = vector.broadcast %51 : vector<1x1x1xf32> to vector<1x1x2xf32>
    %53 = arith.mulf %48, %52 : vector<1x1x2xf32>
    %54 = vector.shape_cast %4 : vector<1x2xf32> to vector<1x1x2xf32>
    %55 = arith.mulf %53, %54 : vector<1x1x2xf32>
    %56 = vector.shape_cast %5 : vector<1x2xf32> to vector<1x1x2xf32>
    %57 = arith.addf %55, %56 : vector<1x1x2xf32>
    %cst_23 = arith.constant 0.000000e+00 : f32
    %58 = vector.broadcast %cst_23 : f32 to vector<1x1x2xf32>
    %59 = arith.maximumf %57, %58 : vector<1x1x2xf32>
    %c0_24 = arith.constant 0 : index
    %c0_25 = arith.constant 0 : index
    %60 = vector.load %arg6[%c0_24, %c0_25] : memref<8x2xf32, #tpu.memory_space<vmem>>, vector<8x2xf32>
    %61 = vector.shape_cast %60 : vector<8x2xf32> to vector<1x8x2xf32>
    %62 = vector.broadcast %59 : vector<1x1x2xf32> to vector<1x8x2xf32>
    %63 = arith.mulf %61, %62 : vector<1x8x2xf32>
    %cst_26 = arith.constant dense<0.000000e+00> : vector<1x8xf32>
    %64 = vector.multi_reduction <add>, %63, %cst_26 [2] : vector<1x8x2xf32> to vector<1x8xf32>
    %65 = vector.shape_cast %64 : vector<1x8xf32> to vector<1x8x1xf32>
    %66 = vector.shape_cast %2 : vector<8x1xf32> to vector<1x8x1xf32>
    %67 = arith.addf %65, %66 : vector<1x8x1xf32>
    %68 = arith.negf %67 : vector<1x8x1xf32>
    %69 = math.exp %68 : vector<1x8x1xf32>
    %cst_27 = arith.constant 1.000000e+00 : f32
    %70 = vector.broadcast %cst_27 : f32 to vector<1x8x1xf32>
    %71 = arith.addf %70, %69 : vector<1x8x1xf32>
    %72 = arith.divf %70, %71 : vector<1x8x1xf32>
    %73 = vector.broadcast %72 : vector<1x8x1xf32> to vector<1x8x256xf32>
    %74 = arith.mulf %0, %73 : vector<1x8x256xf32>
    %c0_28 = arith.constant 0 : index
    %c0_29 = arith.constant 0 : index
    %c0_30 = arith.constant 0 : index
    %75 = vector.load %arg7[%c0_28, %c0_29, %c0_30] : memref<1x8x256xf32, #tpu.memory_space<vmem>>, vector<1x8x256xf32>
    tpu.vector_store %arg7[%c0_28, %c0_29, %c0_30], %74 {strides = array<i32>} : memref<1x8x256xf32, #tpu.memory_space<vmem>>, vector<1x8x256xf32>,
    return
  }
  func.func @transform_0(%arg0: i32) -> (i32, i32, i32) {
    %c0_i32 = arith.constant 0 : i32
    %c0_i32_0 = arith.constant 0 : i32
    %c0_i32_1 = arith.constant 0 : i32
    return %arg0, %c0_i32, %c0_i32_0 : i32, i32, i32
  }
  func.func @transform_1(%arg0: i32) -> (i32, i32) {
    %c0_i32 = arith.constant 0 : i32
    %c0_i32_0 = arith.constant 0 : i32
    %c0_i32_1 = arith.constant 0 : i32
    return %c0_i32, %c0_i32_0 : i32, i32
  }
  func.func @transform_2(%arg0: i32) -> (i32, i32) {
    %c0_i32 = arith.constant 0 : i32
    %c0_i32_0 = arith.constant 0 : i32
    %c0_i32_1 = arith.constant 0 : i32
    return %c0_i32, %c0_i32_0 : i32, i32
  }
  func.func @transform_3(%arg0: i32) -> (i32, i32) {
    %c0_i32 = arith.constant 0 : i32
    %c0_i32_0 = arith.constant 0 : i32
    %c0_i32_1 = arith.constant 0 : i32
    return %c0_i32, %c0_i32_0 : i32, i32
  }
  func.func @transform_4(%arg0: i32) -> (i32, i32) {
    %c0_i32 = arith.constant 0 : i32
    %c0_i32_0 = arith.constant 0 : i32
    %c0_i32_1 = arith.constant 0 : i32
    return %c0_i32, %c0_i32_0 : i32, i32
  }
  func.func @transform_5(%arg0: i32) -> (i32, i32) {
    %c0_i32 = arith.constant 0 : i32
    %c0_i32_0 = arith.constant 0 : i32
    %c0_i32_1 = arith.constant 0 : i32
    return %c0_i32, %c0_i32_0 : i32, i32
  }
  func.func @transform_6(%arg0: i32) -> (i32, i32, i32) {
    %c0_i32 = arith.constant 0 : i32
    %c0_i32_0 = arith.constant 0 : i32
    %c0_i32_1 = arith.constant 0 : i32
    return %arg0, %c0_i32, %c0_i32_0 : i32, i32, i32
  }
}

</mosaic_0001>

<llo_original>
// kernel: tpu_custom_call.1
$region0: #{tpu_custom_call.1}
  #allocation0 [shape = 'u32[]', space=smem, size = 0x4, offset = 0x4, fixed_abs, tag = 'smem constant byte address 0x4 - core index']
  #allocation1 [shape = 'u32[144,128]{1,0:T(1,128)}', space=vmem, size = 0x12000, scoped, tag = 'internal scratch']
  #allocation2 [shape = 'f32[1,1]{1,0:T(1,128)S(1)}', space=vmem, size = 0x200, scoped, tag = 'scoped memory for tpu_custom_call.1']
  %s0 = inlined_call_operand.vmem [shape: f32[2,8,256], index: 0, kind: input, shape index: {}]
  %s1 = inlined_call_operand.<no memory space> [shape: f32[1,1], index: 1, kind: input, shape index: {}]
  %s2 = inlined_call_operand.vmem [shape: f32[8,2], index: 2, kind: input, shape index: {}]
  %s3 = inlined_call_operand.vmem [shape: f32[3,2], index: 3, kind: input, shape index: {}]
  %s4 = inlined_call_operand.vmem [shape: f32[8,2], index: 4, kind: input, shape index: {}]
  %s5 = inlined_call_operand.vmem [shape: f32[8,2], index: 5, kind: input, shape index: {}]
  %s6 = inlined_call_operand.hbm [shape: f32[2,8,256], index: 6, kind: output, shape index: {}]
  %s7 = sld [smem:[#allocation0]]
  $region57: #{tpu_custom_call.1} parent=0
    _
  %s9 = ssub.s32 1, %s7
  %s10 = scalar_select 0, %s9, %s7
  %v11 = vstv %s1
  %12 = vst [vmem:[#allocation2] sm:$0x1] %v11
  $region1: #{tpu_custom_call.1} parent=0
    #allocation3 [shape = 'u8[16384]{0}', space=vmem, size = 0x4000, scoped, tag = 'output window, operand 0']
    #allocation4 [shape = 's32[2]{0}', space=sflag, size = 0x8, scoped, tag = 'scoped memory for tpu_custom_call.1']
    %13 = vsyncpa [#allocation4], 0
    %s14 = scalar_lea.sflag [#allocation4], 1
    %15 = vsyncpa %s14, 0
    loop: start=0, step=1, limit=4
    $region2: #{tpu_custom_call.1} parent=1 // loop_pre_header
      _
    $region3: #{tpu_custom_call.1} parent=1 // loop_header
      %s17 = sphi 0, %s21
      %p18 = scmp.ge.s32.totalorder %s17, 4
      %s27 = sphi 0, %s29
      %s30 = sphi 0, %s27
      %s31 = sphi 0, %s30
      %s47 = sphi 0, %s31
      %s51 = sphi 0, %s51
      %s53 = sphi 0, %s51
      %s54 = sphi 0, %s53
      %s68 = sphi 0, %s54
      %s72 = sphi 0, %s72
      %s74 = sphi 0, %s72
      %s75 = sphi 0, %s74
      %s89 = sphi 0, %s75
      %s93 = sphi 0, %s93
      %s95 = sphi 0, %s93
      %s96 = sphi 0, %s95
      %s110 = sphi 0, %s96
      %s114 = sphi 0, %s114
      %s116 = sphi 0, %s114
      %s117 = sphi 0, %s116
      %s131 = sphi 0, %s117
      %s135 = sphi 0, %s135
      %s137 = sphi 0, %s135
      %s138 = sphi 0, %s137
      %s152 = sphi 0, %s138
      %s158 = sphi 0, %s160
      %s161 = sphi 0, %s158
      %s162 = sphi 0, %s161
      %s178 = sphi 0, %s162
    $region4: #{tpu_custom_call.1} parent=1 // loop_header_branch
      %20 = sbr.rel (%p18) target = $region8
    $region5: #{tpu_custom_call.1} parent=1 // loop_body
      %s22 = ssub.s32 %s17, 1
      %s23 = ssub.s32 %s17, 2
      %s24 = sadd.s32 %s17, 1
      %s25 = ssub.s32 %s17, %s24
      %p26 = scmp.eq.s32.totalorder %s25, 0
      %s28 = sadd.s32 %s27, 1
      %s29 = scalar_select %p26, %s27, %s28
      %p32 = pneg %p26
      %p33 = scmp.eq.s32.totalorder %s17, 1
      %p34 = por %p32, %p33
      %p35 = scmp.ne.s32.totalorder %s27, %s30
      %p36 = scmp.eq.s32.totalorder %s17, 0
      %p37 = por %p35, %p36
      %p38 = scmp.ne.s32.totalorder %s27, %s30
      %p39 = scmp.eq.s32.totalorder %s22, 1
      %p40 = por %p38, %p39
      %p41 = scmp.ne.s32.totalorder %s30, %s31
      %p42 = scmp.eq.s32.totalorder %s22, 0
      %p43 = por %p41, %p42
      %p44 = scmp.ne.s32.totalorder %s30, %s31
      %p45 = scmp.eq.s32.totalorder %s23, 1
      %p46 = por %p44, %p45
      %p48 = scmp.ne.s32.totalorder %s31, %s47
      %p49 = scmp.eq.s32.totalorder %s23, 0
      %p50 = por %p48, %p49
      %s52 = sadd.s32 %s51, 1
      %p55 = scmp.eq.s32.totalorder %s17, 1
      %p56 = scmp.ne.s32.totalorder %s51, %s53
      %p57 = scmp.eq.s32.totalorder %s17, 0
      %p58 = por %p56, %p57
      %p59 = scmp.ne.s32.totalorder %s51, %s53
      %p60 = scmp.eq.s32.totalorder %s22, 1
      %p61 = por %p59, %p60
      %p62 = scmp.ne.s32.totalorder %s53, %s54
      %p63 = scmp.eq.s32.totalorder %s22, 0
      %p64 = por %p62, %p63
      %p65 = scmp.ne.s32.totalorder %s53, %s54
      %p66 = scmp.eq.s32.totalorder %s23, 1
      %p67 = por %p65, %p66
      %p69 = scmp.ne.s32.totalorder %s54, %s68
      %p70 = scmp.eq.s32.totalorder %s23, 0
      %p71 = por %p69, %p70
      %s73 = sadd.s32 %s72, 1
      %p76 = scmp.eq.s32.totalorder %s17, 1
      %p77 = scmp.ne.s32.totalorder %s72, %s74
      %p78 = scmp.eq.s32.totalorder %s17, 0
      %p79 = por %p77, %p78
      %p80 = scmp.ne.s32.totalorder %s72, %s74
      %p81 = scmp.eq.s32.totalorder %s22, 1
      %p82 = por %p80, %p81
      %p83 = scmp.ne.s32.totalorder %s74, %s75
      %p84 = scmp.eq.s32.totalorder %s22, 0
      %p85 = por %p83, %p84
      %p86 = scmp.ne.s32.totalorder %s74, %s75
      %p87 = scmp.eq.s32.totalorder %s23, 1
      %p88 = por %p86, %p87
      %p90 = scmp.ne.s32.totalorder %s75, %s89
      %p91 = scmp.eq.s32.totalorder %s23, 0
      %p92 = por %p90, %p91
      %s94 = sadd.s32 %s93, 1
      %p97 = scmp.eq.s32.totalorder %s17, 1
      %p98 = scmp.ne.s32.totalorder %s93, %s95
      %p99 = scmp.eq.s32.totalorder %s17, 0
      %p100 = por %p98, %p99
      %p101 = scmp.ne.s32.totalorder %s93, %s95
      %p102 = scmp.eq.s32.totalorder %s22, 1
      %p103 = por %p101, %p102
      %p104 = scmp.ne.s32.totalorder %s95, %s96
      %p105 = scmp.eq.s32.totalorder %s22, 0
      %p106 = por %p104, %p105
      %p107 = scmp.ne.s32.totalorder %s95, %s96
      %p108 = scmp.eq.s32.totalorder %s23, 1
      %p109 = por %p107, %p108
      %p111 = scmp.ne.s32.totalorder %s96, %s110
      %p112 = scmp.eq.s32.totalorder %s23, 0
      %p113 = por %p111, %p112
      %s115 = sadd.s32 %s114, 1
      %p118 = scmp.eq.s32.totalorder %s17, 1
      %p119 = scmp.ne.s32.totalorder %s114, %s116
      %p120 = scmp.eq.s32.totalorder %s17, 0
      %p121 = por %p119, %p120
      %p122 = scmp.ne.s32.totalorder %s114, %s116
      %p123 = scmp.eq.s32.totalorder %s22, 1
      %p124 = por %p122, %p123
      %p125 = scmp.ne.s32.totalorder %s116, %s117
      %p126 = scmp.eq.s32.totalorder %s22, 0
      %p127 = por %p125, %p126
      %p128 = scmp.ne.s32.totalorder %s116, %s117
      %p129 = scmp.eq.s32.totalorder %s23, 1
      %p130 = por %p128, %p129
      %p132 = scmp.ne.s32.totalorder %s117, %s131
      %p133 = scmp.eq.s32.totalorder %s23, 0
      %p134 = por %p132, %p133
      %s136 = sadd.s32 %s135, 1
      %p139 = scmp.eq.s32.totalorder %s17, 1
      %p140 = scmp.ne.s32.totalorder %s135, %s137
      %p141 = scmp.eq.s32.totalorder %s17, 0
      %p142 = por %p140, %p141
      %p143 = scmp.ne.s32.totalorder %s135, %s137
      %p144 = scmp.eq.s32.totalorder %s22, 1
      %p145 = por %p143, %p144
      %p146 = scmp.ne.s32.totalorder %s137, %s138
      %p147 = scmp.eq.s32.totalorder %s22, 0
      %p148 = por %p146, %p147
      %p149 = scmp.ne.s32.totalorder %s137, %s138
      %p150 = scmp.eq.s32.totalorder %s23, 1
      %p151 = por %p149, %p150
      %p153 = scmp.ne.s32.totalorder %s138, %s152
      %p154 = scmp.eq.s32.totalorder %s23, 0
      %p155 = por %p153, %p154
      %s156 = ssub.s32 %s17, %s24
      %p157 = scmp.eq.s32.totalorder %s156, 0
      %s159 = sadd.s32 %s158, 1
      %s160 = scalar_select %p157, %s158, %s159
      %p163 = pneg %p157
      %p164 = scmp.eq.s32.totalorder %s17, 1
      %p165 = por %p163, %p164
      %p166 = scmp.ne.s32.totalorder %s158, %s161
      %p167 = scmp.eq.s32.totalorder %s17, 0
      %p168 = por %p166, %p167
      %p169 = scmp.ne.s32.totalorder %s158, %s161
      %p170 = scmp.eq.s32.totalorder %s22, 1
      %p171 = por %p169, %p170
      %p172 = scmp.ne.s32.totalorder %s161, %s162
      %p173 = scmp.eq.s32.totalorder %s22, 0
      %p174 = por %p172, %p173
      %p175 = scmp.ne.s32.totalorder %s161, %s162
      %p176 = scmp.eq.s32.totalorder %s23, 1
      %p177 = por %p175, %p176
      %p179 = scmp.ne.s32.totalorder %s162, %s178
      %p180 = scmp.eq.s32.totalorder %s23, 0
      %p181 = por %p179, %p180
      %p182 = scmp.le.s32.totalorder 1, %s17
      %p183 = scmp.lt.s32.totalorder %s17, 3
      %p184 = pnand %p182, %p183
      %p185 = pneg %p184
      // Predicated region
      $region9: #{tpu_custom_call.1} parent=5 // pred_check
        _
      $region10: #{tpu_custom_call.1} parent=5 // pred_check_branch
        %187 = sbr.rel (%p184) target = $region12
      $region11: #{tpu_custom_call.1} parent=5 // pred_region
        %s188 = ssub.s32 %s17, 1
        // Predicated region
        $region13: #{tpu_custom_call.1} parent=11 // pred_check
          %p189 = pneg %p64
        $region14: #{tpu_custom_call.1} parent=11 // pred_check_branch
          %191 = sbr.rel (%p189) target = $region16
        $region15: #{tpu_custom_call.1} parent=11 // pred_region
          _
        $region16: #{tpu_custom_call.1} parent=11 // pred_fallthru
          _
        // Predicated region
        $region17: #{tpu_custom_call.1} parent=11 // pred_check
          %p192 = pneg %p85
        $region18: #{tpu_custom_call.1} parent=11 // pred_check_branch
          %194 = sbr.rel (%p192) target = $region20
        $region19: #{tpu_custom_call.1} parent=11 // pred_region
          _
        $region20: #{tpu_custom_call.1} parent=11 // pred_fallthru
          _
        // Predicated region
        $region21: #{tpu_custom_call.1} parent=11 // pred_check
          %p195 = pneg %p106
        $region22: #{tpu_custom_call.1} parent=11 // pred_check_branch
          %197 = sbr.rel (%p195) target = $region24
        $region23: #{tpu_custom_call.1} parent=11 // pred_region
          _
        $region24: #{tpu_custom_call.1} parent=11 // pred_fallthru
          _
        // Predicated region
        $region25: #{tpu_custom_call.1} parent=11 // pred_check
          %p198 = pneg %p127
        $region26: #{tpu_custom_call.1} parent=11 // pred_check_branch
          %200 = sbr.rel (%p198) target = $region28
        $region27: #{tpu_custom_call.1} parent=11 // pred_region
          _
        $region28: #{tpu_custom_call.1} parent=11 // pred_fallthru
          _
        // Predicated region
        $region29: #{tpu_custom_call.1} parent=11 // pred_check
          %p201 = pneg %p148
        $region30: #{tpu_custom_call.1} parent=11 // pred_check_branch
          %203 = sbr.rel (%p201) target = $region32
        $region31: #{tpu_custom_call.1} parent=11 // pred_region
          _
        $region32: #{tpu_custom_call.1} parent=11 // pred_fallthru
          _
      $region12: #{tpu_custom_call.1} parent=5 // pred_fallthru
        _
      %p204 = scmp.lt.s32.totalorder %s17, 2
      // Predicated region
      $region33: #{tpu_custom_call.1} parent=5 // pred_check
        %p205 = pneg %p204
      $region34: #{tpu_custom_call.1} parent=5 // pred_check_branch
        %207 = sbr.rel (%p205) target = $region36
      $region35: #{tpu_custom_call.1} parent=5 // pred_region
        // Predicated region
        $region37: #{tpu_custom_call.1} parent=35 // pred_check
          %p208 = pneg %p37
        $region38: #{tpu_custom_call.1} parent=35 // pred_check_branch
          %210 = sbr.rel (%p208) target = $region40
        $region39: #{tpu_custom_call.1} parent=35 // pred_region
          %p211 = scmp.lt.s32.totalorder %s17, 1
          %s212 = scalar_select %p211, %s17, 1
          %s213 = smul.addr %s212, 2
          %s214 = smul.addr %s213, 8
          %s215 = scalar_lea.vmem %s0, %s214
        $region40: #{tpu_custom_call.1} parent=35 // pred_fallthru
          _
      $region36: #{tpu_custom_call.1} parent=5 // pred_fallthru
        _
      %p216 = scmp.le.s32.totalorder 1, %s17
      %p217 = scmp.lt.s32.totalorder %s17, 3
      %p218 = pnand %p216, %p217
      %p219 = pneg %p218
      // Predicated region
      $region41: #{tpu_custom_call.1} parent=5 // pred_check
        _
      $region42: #{tpu_custom_call.1} parent=5 // pred_check_branch
        %221 = sbr.rel (%p218) target = $region44
      $region43: #{tpu_custom_call.1} parent=5 // pred_region
        %s222 = ssub.s32 %s17, 1
        %p223 = scmp.lt.s32.totalorder %s22, 1
        %s224 = scalar_select %p223, %s22, 1
        %s225 = smul.addr %s224, 2
        %s226 = smul.addr %s225, 8
        %s227 = scalar_lea.vmem %s0, %s226
        %p228 = pneg %p43
        %p229 = pneg %p40
        %p230 = pneg %p64
        %p231 = pneg %p61
        %p232 = pneg %p85
        %p233 = pneg %p82
        %p234 = pneg %p106
        %p235 = pneg %p103
        %p236 = pneg %p127
        %p237 = pneg %p124
        %p238 = pneg %p148
        %p239 = pneg %p145
        %p240 = pneg %p174
        %p241 = pneg %p171
        %s242 = sand.u32 %s161, 1
        %s243 = scalar_lea.sflag [#allocation4], %s242
        %s244 = sand.u32 %s161, 1
        %s245 = smul.addr %s244, 16
        %s246 = scalar_lea.vmem [#allocation3], %s245
        %p247 = scmp.lt.s32.totalorder %s22, 1
        %s248 = scalar_select %p247, %s22, 1
        %s249 = smul.addr %s248, 2
        %s250 = smul.addr %s249, 8
        %s251 = scalar_lea.vmem %s0, %s250
        %v252 = vld [vmem:[%s251] sm:$0xff]
        %v253 = vld [vmem:[%s251 + $0x8] sm:$0xff]
        %v254 = vld [vmem:[%s2] sm:$0xff]
        %v255 = vld [vmem:[%s3] sm:$0x1]
        %v256 = vld [vmem:[%s3 + $0x1] sm:$0x1]
        %v257 = vld [vmem:[%s3 + $0x2] sm:$0x1]
        %259 = vset.pattern.permute.xlu0 0
        %260 = vperm.xlu0 %259, %v254
        %v261 = vpop.permute.xlu0 %260
        %v263 = vmul.f32 %v252, %v261
        %v264 = vmul.f32 %v253, %v261
        %v265 = vrot.slane %v263, 4
        %v266 = vadd.f32 %v263, %v265
        %v267 = vrot.slane %v266, 2
        %v268 = vadd.f32 %v266, %v267
        %v269 = vrot.slane %v268, 1
        %v270 = vadd.f32 %v268, %v269
        %v271 = vrot.slane %v264, 4
        %v272 = vadd.f32 %v264, %v271
        %v273 = vrot.slane %v272, 2
        %v274 = vadd.f32 %v272, %v273
        %v275 = vrot.slane %v274, 1
        %v276 = vadd.f32 %v274, %v275
        %v277 = vld [vmem:[#allocation2] sm:$0x1]
        %s278 = vtos %v277
        %v279 = vstv %s278
        %v280 = vadd.f32 %v270, %v279
        %v281 = vadd.f32 %v276, %v279
        %v282 = vmax.f32 %v280, %v281
        %283 = vmax.xlane.f32.xlu0 %v282
        %v284 = vpop.xlane.xlu0 %283
        %v285 = vsub.f32 %v280, %v284
        %v286 = vsub.f32 %v281, %v284
        %v287 = vmul.f32 %v285, 1.442695
        %v288 = vpow.pop %v287
        %v289 = vmul.f32 %v286, 1.442695
        %v290 = vpow.pop %v289
        %v291 = vadd.f32 %v288, %v290
        %292 = vadd.xlane.f32.xlu0 %v291
        %v293 = vpop.xlane.xlu0 %292
        %v294 = vrcp.pop %v293
        %v295 = vmul.f32 %v288, %v294
        %v296 = vmul.f32 %v290, %v294
        %v297 = vmul.f32 %v252, %v295
        %v298 = vmul.f32 %v253, %v296
        %v299 = vadd.f32 %v297, %v298
        %300 = vadd.xlane.f32.xlu0 %v299
        %v301 = vpop.xlane.xlu0 %300
        %v302 = vld [vmem:[%s4] sm:$0xff]
        %v303 = vmul.f32 %v301, %v302
        %vm304 = vcmask 15360
        %v305 = vsel %vm304, %v303, 0.0
        %v306 = vrot.slane %v305, 4
        %v307 = vadd.f32 %v305, %v306
        %v308 = vrot.slane %v307, 2
        %v309 = vadd.f32 %v307, %v308
        %v310 = vrot.slane %v309, 1
        %v311 = vadd.f32 %v309, %v310
        %v312 = vadd.f32 %v311, %v255
        %vm313 = vcmask 8192
        %v314 = vsel %vm313, %v312, 0.0
        %315 = vadd.xlane.f32.xlu0 %v314
        %v316 = vpop.xlane.xlu0 %315
        %v317 = vrcp.pop 2.0
        %v318 = vmul.f32 %v316, %v317
        %v319 = vsub.f32 %v312, %v318
        %v320 = vmul.f32 %v319, %v319
        %v321 = vsel %vm313, %v320, 0.0
        %322 = vadd.xlane.f32.xlu0 %v321
        %v323 = vpop.xlane.xlu0 %322
        %v324 = vmul.f32 %v323, %v317
        %v325 = vadd.f32 %v324, 1e-05
        %v326 = vrsqrt.pop %v325
        %v327 = vmul.f32 %v319, %v326
        %v328 = vmul.f32 %v327, %v256
        %v329 = vadd.f32 %v328, %v257
        %v330 = vmax.f32 %v329, 0.0
        %v331 = vld [vmem:[%s5] sm:$0xff]
        %v332 = vlaneseq
        %v333 = vshrl.u32 %v332, 7
        %v334 = vsub.s32 0, %v333
        %v335 = vrot.slane %v330, %v334
        %v336 = vmul.f32 %v331, %v335
        %v337 = vsel %vm304, %v336, 0.0
        %338 = vadd.xlane.f32.xlu0 %v337
        %v339 = vpop.xlane.xlu0 %338
        %v340 = vadd.f32 %v339, %v254
        %v341 = vxor.u32 %v340, 2147483648
        %v342 = vmul.f32 %v341, 1.442695
        %v343 = vpow.pop %v342
        %v344 = vadd.f32 %v343, 1.0
        %v345 = vrcp.pop %v344
        %v346 = vmul.f32 1.0, %v345
        %348 = vset.pattern.permute.xlu0 1
        %349 = vperm.xlu0 %348, %v346
        %v350 = vpop.permute.xlu0 %349
        %v352 = vmul.f32 %v252, %v350
        %v353 = vmul.f32 %v253, %v350
        %354 = vst [vmem:[%s246] sm:$0xff] %v352
        %355 = vst [vmem:[%s246 + $0x8] sm:$0xff] %v353
        %s356 = sand.u32 %s161, 1
        %s357 = scalar_lea.sflag [#allocation4], %s356
        %s358 = sand.u32 %s161, 1
        %s359 = smul.addr %s358, 16
        %s360 = scalar_lea.vmem [#allocation3], %s359
        // Predicated region
        $region45: #{tpu_custom_call.1} parent=43 // pred_check
          %p361 = pneg %p171
        $region46: #{tpu_custom_call.1} parent=43 // pred_check_branch
          %363 = sbr.rel (%p361) target = $region48
        $region47: #{tpu_custom_call.1} parent=43 // pred_region
          %s365 = ssub.s32 256, 256
          %366 = vsyncadd %s357, %s365
          %s367 = smul.addr %s22, 2
          %s368 = smul.addr %s367, 128
          %s369 = scalar_lea.hbm %s6, %s368
          %s371 = sshll.u32 %s360, 4
          %s372 = int_to_ptr.vmem [resolvable:$true] %s371
          %374 = dma.vmem_to_hbm [thread:$0]  %s372, 256, %s369, %s357
        $region48: #{tpu_custom_call.1} parent=43 // pred_fallthru
          _
      $region44: #{tpu_custom_call.1} parent=5 // pred_fallthru
        _
      %p375 = scmp.le.s32.totalorder 2, %s17
      // Predicated region
      $region49: #{tpu_custom_call.1} parent=5 // pred_check
        %p376 = pneg %p375
      $region50: #{tpu_custom_call.1} parent=5 // pred_check_branch
        %378 = sbr.rel (%p376) target = $region52
      $region51: #{tpu_custom_call.1} parent=5 // pred_region
        %s379 = ssub.s32 %s17, 2
        // Predicated region
        $region53: #{tpu_custom_call.1} parent=51 // pred_check
          %p380 = pneg %p177
        $region54: #{tpu_custom_call.1} parent=51 // pred_check_branch
          %382 = sbr.rel (%p380) target = $region56
        $region55: #{tpu_custom_call.1} parent=51 // pred_region
          %s383 = sand.u32 %s162, 1
          %s384 = scalar_lea.sflag [#allocation4], %s383
          %s385 = sand.u32 %s162, 1
          %s386 = smul.addr %s385, 16
          %s387 = scalar_lea.vmem [#allocation3], %s386
          %388 = dma.done %s384, 256
        $region56: #{tpu_custom_call.1} parent=51 // pred_fallthru
          _
      $region52: #{tpu_custom_call.1} parent=5 // pred_fallthru
        _
    $region6: #{tpu_custom_call.1} parent=1 // loop_footer
      %s21 = sadd.s32 1, %s17
    $region7: #{tpu_custom_call.1} parent=1 // loop_footer_branch
      %16 = sbr.rel target = $region3
    $region8: #{tpu_custom_call.1} parent=1 // loop_exit
      _
    %389 = vsyncpa [#allocation4], 1
    %s390 = scalar_lea.sflag [#allocation4], 1
    %391 = vsyncpa %s390, 1

</llo_original>
